<compile_context>
chip_gen: v6e
topology: v6e:2x2x1
jax: 0.10.0
libtpu: 0.0.40
codegen_flags: <defaults>
</compile_context>

<pallas_src>
import math

import jax
import jax.numpy as jnp
from jax.experimental import pallas as pl
from jax.experimental.pallas import tpu as pltpu

_EPS = 1e-12          # F.normalize default eps
_LANE = 128
_BF16_SUBLANE = 16    # bf16 packs 16 sublanes per vreg


def _round_up(n, m):
    return (n + m - 1) // m * m


def _vmem_budget_bytes():
    """~75% of physical VMEM (v7x: 64 MiB -> 48 MiB, v5e/v6e: 128 -> 96 MiB)."""
    cap = 64 * 2 ** 20                      # conservative default (v7x per-core)
    try:
        cap = int(pltpu.get_tpu_info().vmem_capacity_bytes)
    except Exception:
        pass
    return (cap * 3) // 4


def _vmem_bytes(tile_b, tile_c, dp, out_bytes):
    """Double-buffered blocks plus in-kernel f32 temporaries for one step."""
    w_tile = tile_c * dp * 2                # bf16 weight tile
    x_tile = tile_b * dp * 2                # bf16 activation tile
    o_tile = tile_b * tile_c * out_bytes    # output tile
    lab_tile = tile_b * _LANE * 4           # (tile_b, 1) int32, lane-padded
    temps = 5 * tile_b * tile_c * 4         # cosine / sine / phi / iota / select
    return 2 * (w_tile + x_tile + o_tile + lab_tile) + temps


def _make_arcface_kernel(scale_factor: float, margin: float):
    cos_m = math.cos(margin)
    sin_m = math.sin(margin)
    th = math.cos(math.pi - margin)
    mm = math.sin(math.pi - margin) * margin

    def arcface_kernel(xn_ref, wn_ref, lab_ref, out_ref):
        # xn_ref : (TILE_B, Dp)     bf16, rows L2-normalized in the wrapper.
        # wn_ref : (Dp, TILE_C)     bf16, columns L2-normalized (classes).
        # lab_ref: (TILE_B, 1)      int32 labels (-1 marks padded rows).
        # out_ref: (TILE_B, TILE_C) logits for this (batch, class) tile.
        cosine = jnp.dot(xn_ref[...], wn_ref[...],
                         preferred_element_type=jnp.float32)

        # Clamp before sqrt: rounding can push cosine^2 slightly above 1.
        sine = jnp.sqrt(jnp.clip(1.0 - cosine * cosine, 0.0, 1.0))
        phi = cosine * cos_m - sine * sin_m
        phi = jnp.where(cosine > th, phi, cosine - mm)

        # one_hot.scatter_ restricted to this class tile: compare the local
        # lane iota against (label - tile_offset) — one (B,1) subtract instead
        # of a full-tile add.
        tb, tc = out_ref.shape
        col0 = pl.program_id(0) * tc
        local = jax.lax.broadcasted_iota(jnp.int32, (tb, tc), 1)
        is_target = local == (lab_ref[...] - col0)

        out_ref[...] = (jnp.where(is_target, phi, cosine)
                        * scale_factor).astype(out_ref.dtype)

    return arcface_kernel


def arcface_forward(x, weight, label, *, scale_factor=64.0, margin=0.5,
                    tile_c=512, tile_b=1024, out_dtype=jnp.float32):
    """ArcFace logits. x: (B, D), weight: (C, D), label: (B,) int. → (B, C).

    out_dtype=jnp.bfloat16 gives a bf16 logit writeback (f32 accumulation is
    kept internally) and cuts HBM output traffic for large batches.
    """
    B, D = x.shape
    C, D2 = weight.shape
    assert D == D2
    out_bytes = jnp.dtype(out_dtype).itemsize

    # ---- wrapper-side prep (fused normalize + cast passes) -----------------
    x32 = x.astype(jnp.float32)
    inv_x = jax.lax.rsqrt(
        jnp.maximum(jnp.sum(x32 * x32, axis=-1, keepdims=True), _EPS * _EPS))
    xn = (x32 * inv_x).astype(jnp.bfloat16)                        # (B, D)

    # Weight rows L2-normalized once here (f32 math, matching F.normalize's
    # x / max(||x||, eps)), cast to bf16 and transposed to (D, C) so the kernel
    # matmul is a plain (M,K)x(K,N) with no per-step transpose and the weight
    # tile is lane-dense in C. Zero (padded) rows stay zero: cosine == 0.
    w32 = weight.astype(jnp.float32)
    inv_w = jax.lax.rsqrt(
        jnp.maximum(jnp.sum(w32 * w32, axis=-1, keepdims=True), _EPS * _EPS))
    wn_t = (w32 * inv_w).astype(jnp.bfloat16).T                    # (D, C)

    lab = label.reshape(B, 1).astype(jnp.int32)

    # ---- tile sizing --------------------------------------------------------
    Dp = _round_up(D, _LANE)
    tile_b = max(_BF16_SUBLANE,
                 _round_up(min(tile_b, _round_up(B, _BF16_SUBLANE)),
                           _BF16_SUBLANE))
    tile_c = max(_LANE, _round_up(min(tile_c, C), _LANE))
    # Prefer >= 2 class tiles so the parallel C axis can shard across cores.
    if _round_up(C, tile_c) // tile_c < 2 and C > _LANE:
        tile_c = max(_LANE, _round_up((C + 1) // 2, _LANE))

    budget = _vmem_budget_bytes()
    while _vmem_bytes(tile_b, tile_c, Dp, out_bytes) > budget and tile_c > _LANE:
        tile_c = max(_LANE, _round_up(tile_c // 2, _LANE))
    while (_vmem_bytes(tile_b, tile_c, Dp, out_bytes) > budget
           and tile_b > _BF16_SUBLANE):
        tile_b = max(_BF16_SUBLANE, _round_up(tile_b // 2, _BF16_SUBLANE))

    Bp = _round_up(B, tile_b)
    Cp = _round_up(C, tile_c)

    # ---- padding (skipped when already aligned; bf16, single cheap pass) ---
    if (Bp, Dp) != (B, D):
        xn = jnp.zeros((Bp, Dp), jnp.bfloat16).at[:B, :D].set(xn)
    if (Dp, Cp) != (D, C):
        wn_t = jnp.zeros((Dp, Cp), jnp.bfloat16).at[:D, :C].set(wn_t)
    if Bp != B:
        lab = jnp.full((Bp, 1), -1, jnp.int32).at[:B].set(lab)

    needed = _vmem_bytes(tile_b, tile_c, Dp, out_bytes)
    vmem_limit = int(min(budget, max(32 * 2 ** 20, 2 * needed)))

    kernel = _make_arcface_kernel(scale_factor, margin)

    out = pl.pallas_call(
        kernel,
        out_shape=jax.ShapeDtypeStruct((Bp, Cp), out_dtype),
        # Class tiles outer, batch tiles inner: the weight block index only
        # depends on the outer axis, so each weight tile is DMA'd once and
        # stays resident across the inner batch loop.
        grid=(Cp // tile_c, Bp // tile_b),
        in_specs=[
            pl.BlockSpec((tile_b, Dp), lambda i, j: (j, 0)),      # xn tile
            pl.BlockSpec((Dp, tile_c), lambda i, j: (0, i)),      # weight.T tile
            pl.BlockSpec((tile_b, 1), lambda i, j: (j, 0)),       # labels
        ],
        out_specs=pl.BlockSpec((tile_b, tile_c), lambda i, j: (j, i)),
        compiler_params=pltpu.CompilerParams(
            dimension_semantics=("parallel", "parallel"),
            vmem_limit_bytes=vmem_limit,
        ),
    )(xn, wn_t, lab)

    return out[:B, :C]


def _xavier_uniform(key, out_features, in_features):
    # nn.init.xavier_uniform_ on (out, in): bound = sqrt(6 / (fan_in + fan_out))
    bound = math.sqrt(6.0 / (in_features + out_features))
    return jax.random.uniform(
        key, (out_features, in_features), jnp.float32, -bound, bound)


def _reference_arcface(x, weight, label, scale_factor=64.0, margin=0.5):
    cos_m, sin_m = math.cos(margin), math.sin(margin)
    th = math.cos(math.pi - margin)
    mm = math.sin(math.pi - margin) * margin
    xn = x / jnp.maximum(jnp.linalg.norm(x, axis=-1, keepdims=True), _EPS)
    wn = weight / jnp.maximum(jnp.linalg.norm(weight, axis=-1, keepdims=True), _EPS)
    cosine = xn @ wn.T
    sine = jnp.sqrt(jnp.clip(1.0 - cosine ** 2, 0.0, 1.0))
    phi = cosine * cos_m - sine * sin_m
    phi = jnp.where(cosine > th, phi, cosine - mm)
    one_hot = jax.nn.one_hot(label, weight.shape[0], dtype=jnp.float32)
    return (one_hot * phi + (1.0 - one_hot) * cosine) * scale_factor


if __name__ == "__main__":
    # Small shapes: batch=8, in_features=32, out_features (identities)=200.
    # D pads to 128, C pads to 256 with tile_c=128 → a (2, 1) grid.
    B, D, C = 8, 32, 200

    key = jax.random.PRNGKey(0)
    kx, kw, kl = jax.random.split(key, 3)

    x = jax.random.normal(kx, (B, D), dtype=jnp.float32)
    weight = _xavier_uniform(kw, C, D)
    label = jax.random.randint(kl, (B,), 0, C, dtype=jnp.int32)

    logits = arcface_forward(x, weight, label, scale_factor=64.0, margin=0.5,
                             tile_c=128)
    logits = jax.block_until_ready(logits)

    ref = _reference_arcface(x, weight, label)
    assert logits.shape == (B, C)
    # bf16 MXU operands (with f32 accumulation and f32 wrapper-side norms) →
    # loosened tolerance vs the pure-f32 reference; logits span roughly ±64.
    assert jnp.allclose(logits, ref, atol=0.35, rtol=1e-3), "mismatch vs reference"

    print("KERNEL_OK")
</pallas_src>

<mosaic_0001>
module attributes {stable_mosaic.version = 11 : i64} {
  func.func @arcface_kernel(%arg0: i32, %arg1: i32, %arg2: memref<16x128xbf16, #tpu.memory_space<vmem>>, %arg3: memref<128x128xbf16, #tpu.memory_space<vmem>>, %arg4: memref<16x1xi32, #tpu.memory_space<vmem>>, %arg5: memref<16x128xf32, #tpu.memory_space<vmem>>) attributes {dimension_semantics = [#tpu.dimension_semantics<parallel>, #tpu.dimension_semantics<parallel>], iteration_bounds = array<i64: 2, 1>, scalar_prefetch = 0 : i64, scratch_operands = 0 : i64, tpu.core_type = #tpu.core_type<tc>, window_params = [{transform_indices = @transform_0, window_bounds = array<i64: 16, 128>}, {transform_indices = @transform_1, window_bounds = array<i64: 128, 128>}, {transform_indices = @transform_2, window_bounds = array<i64: 16, 1>}, {transform_indices = @transform_3, window_bounds = array<i64: 16, 128>}]} {
    %c0 = arith.constant 0 : index
    %c0_0 = arith.constant 0 : index
    %0 = vector.load %arg2[%c0, %c0_0] : memref<16x128xbf16, #tpu.memory_space<vmem>>, vector<16x128xbf16>
    %c0_1 = arith.constant 0 : index
    %c0_2 = arith.constant 0 : index
    %1 = vector.load %arg3[%c0_1, %c0_2] : memref<128x128xbf16, #tpu.memory_space<vmem>>, vector<128x128xbf16>
    %cst = arith.constant dense<0.000000e+00> : vector<16x128xf32>
    %2 = tpu.matmul %0, %1, %cst {dimension_numbers = #tpu.dot_dimension_numbers<[1], [0], [0], [1], [0, 0, 1, 1], [], []>} : vector<16x128xbf16>, vector<128x128xbf16>, vector<16x128xf32> -> vector<16x128xf32>
    %3 = arith.mulf %2, %2 : vector<16x128xf32>
    %cst_3 = arith.constant 1.000000e+00 : f32
    %4 = vector.broadcast %cst_3 : f32 to vector<16x128xf32>
    %5 = arith.subf %4, %3 : vector<16x128xf32>
    %cst_4 = arith.constant 0.000000e+00 : f32
    %cst_5 = arith.constant 1.000000e+00 : f32
    %6 = vector.broadcast %cst_4 : f32 to vector<16x128xf32>
    %7 = arith.maximumf %6, %5 : vector<16x128xf32>
    %8 = vector.broadcast %cst_5 : f32 to vector<16x128xf32>
    %9 = arith.minimumf %8, %7 : vector<16x128xf32>
    %10 = math.sqrt %9 : vector<16x128xf32>
    %cst_6 = arith.constant 0.87758255 : f32
    %11 = vector.broadcast %cst_6 : f32 to vector<16x128xf32>
    %12 = arith.mulf %2, %11 : vector<16x128xf32>
    %cst_7 = arith.constant 0.47942555 : f32
    %13 = vector.broadcast %cst_7 : f32 to vector<16x128xf32>
    %14 = arith.mulf %10, %13 : vector<16x128xf32>
    %15 = arith.subf %12, %14 : vector<16x128xf32>
    %cst_8 = arith.constant -0.87758255 : f32
    %16 = vector.broadcast %cst_8 : f32 to vector<16x128xf32>
    %17 = arith.cmpf ogt, %2, %16 : vector<16x128xf32>
    %cst_9 = arith.constant 0.239712775 : f32
    %18 = vector.broadcast %cst_9 : f32 to vector<16x128xf32>
    %19 = arith.subf %2, %18 : vector<16x128xf32>
    %20 = arith.select %17, %15, %19 : vector<16x128xi1>, vector<16x128xf32>
    %c128_i32 = arith.constant 128 : i32
    %21 = arith.muli %arg0, %c128_i32 : i32
    %22 = tpu.iota {dimensions = array<i32: 1>} : vector<16x128xi32>
    %c0_10 = arith.constant 0 : index
    %c0_11 = arith.constant 0 : index
    %23 = vector.load %arg4[%c0_10, %c0_11] : memref<16x1xi32, #tpu.memory_space<vmem>>, vector<16x1xi32>
    %24 = vector.broadcast %21 : i32 to vector<16x1xi32>
    %25 = arith.subi %23, %24 : vector<16x1xi32>
    %26 = vector.broadcast %25 : vector<16x1xi32> to vector<16x128xi32>
    %27 = arith.cmpi eq, %22, %26 : vector<16x128xi32>
    %28 = arith.select %27, %20, %2 : vector<16x128xi1>, vector<16x128xf32>
    %cst_12 = arith.constant 6.400000e+01 : f32
    %29 = vector.broadcast %cst_12 : f32 to vector<16x128xf32>
    %30 = arith.mulf %28, %29 : vector<16x128xf32>
    %c0_13 = arith.constant 0 : index
    %c0_14 = arith.constant 0 : index
    %31 = vector.load %arg5[%c0_13, %c0_14] : memref<16x128xf32, #tpu.memory_space<vmem>>, vector<16x128xf32>
    tpu.vector_store %arg5[%c0_13, %c0_14], %30 {strides = array<i32>} : memref<16x128xf32, #tpu.memory_space<vmem>>, vector<16x128xf32>,
    return
  }
  func.func @transform_0(%arg0: i32, %arg1: i32) -> (i32, i32) {
    %c0_i32 = arith.constant 0 : i32
    %c0_i32_0 = arith.constant 0 : i32
    return %arg1, %c0_i32 : i32, i32
  }
  func.func @transform_1(%arg0: i32, %arg1: i32) -> (i32, i32) {
    %c0_i32 = arith.constant 0 : i32
    %c0_i32_0 = arith.constant 0 : i32
    return %c0_i32, %arg0 : i32, i32
  }
  func.func @transform_2(%arg0: i32, %arg1: i32) -> (i32, i32) {
    %c0_i32 = arith.constant 0 : i32
    %c0_i32_0 = arith.constant 0 : i32
    return %arg1, %c0_i32 : i32, i32
  }
  func.func @transform_3(%arg0: i32, %arg1: i32) -> (i32, i32) {
    %c0_i32 = arith.constant 0 : i32
    return %arg1, %arg0 : i32, i32
  }
}

</mosaic_0001>

<llo_original>
// kernel: tpu_custom_call.1
$region0: #{tpu_custom_call.1}
  #allocation0 [shape = 'u32[]', space=smem, size = 0x4, offset = 0x4, fixed_abs, tag = 'smem constant byte address 0x4 - core index']
  #allocation1 [shape = 'u32[144,128]{1,0:T(1,128)}', space=vmem, size = 0x12000, scoped, tag = 'internal scratch']
  %s0 = inlined_call_operand.vmem [shape: bf16[16,128], index: 0, kind: input, shape index: {}]
  %s1 = inlined_call_operand.hbm [shape: bf16[128,256], index: 1, kind: input, shape index: {}]
  %s2 = inlined_call_operand.vmem [shape: s32[16,1], index: 2, kind: input, shape index: {}]
  %s3 = inlined_call_operand.hbm [shape: f32[16,256], index: 3, kind: output, shape index: {}]
  %s4 = sld [smem:[#allocation0]]
  $region49: #{tpu_custom_call.1} parent=0
    _
  %s6 = ssub.s32 1, %s4
  %s7 = scalar_select 0, %s6, %s4
  $region1: #{tpu_custom_call.1} parent=0
    #allocation2 [shape = 'u8[65536]{0}', space=vmem, size = 0x10000, scoped, tag = 'input window, operand 1']
    #allocation3 [shape = 's32[2]{0}', space=sflag, size = 0x8, scoped, tag = 'scoped memory for tpu_custom_call.1']
    #allocation4 [shape = 's32[2]{0}', space=sflag, size = 0x8, scoped, tag = 'scoped memory for tpu_custom_call.1']
    #allocation5 [shape = 'u8[16384]{0}', space=vmem, size = 0x4000, scoped, tag = 'output window, operand 0']
    %8 = vsyncpa [#allocation3], 0
    %s9 = scalar_lea.sflag [#allocation3], 1
    %10 = vsyncpa %s9, 0
    %11 = vsyncpa [#allocation4], 0
    %s12 = scalar_lea.sflag [#allocation4], 1
    %13 = vsyncpa %s12, 0
    loop: start=0, step=1, limit=4
    $region2: #{tpu_custom_call.1} parent=1 // loop_pre_header
      _
    $region3: #{tpu_custom_call.1} parent=1 // loop_header
      %s15 = sphi 0, %s19
      %p16 = scmp.ge.s32.totalorder %s15, 4
      %s22 = sphi 0, %s34
      %s23 = sphi 0, %s30
      %s24 = sphi 0, %s22
      %s25 = sphi 0, %s23
      %s26 = sphi 0, %s24
      %s27 = sphi 0, %s25
      %s37 = sphi 0, %s39
      %s40 = sphi 0, %s37
      %s41 = sphi 0, %s40
      %s57 = sphi 0, %s41
      %s63 = sphi 0, %s65
      %s66 = sphi 0, %s63
      %s67 = sphi 0, %s66
      %s83 = sphi 0, %s67
      %s89 = sphi 0, %s91
      %s92 = sphi 0, %s89
      %s93 = sphi 0, %s92
      %s109 = sphi 0, %s93
      %s117 = sphi 0, %s119
      %s120 = sphi 0, %s117
      %s121 = sphi 0, %s120
      %s137 = sphi 0, %s121
    $region4: #{tpu_custom_call.1} parent=1 // loop_header_branch
      %18 = sbr.rel (%p16) target = $region8
    $region5: #{tpu_custom_call.1} parent=1 // loop_body
      %s20 = ssub.s32 %s15, 1
      %s21 = ssub.s32 %s15, 2
      %s28 = sadd.s32 1, %s23
      %p29 = scmp.ge.s32.totalorder %s28, 1
      %s30 = scalar_select %p29, 0, %s28
      %s31 = sadd.s32 1, %s22
      %s32 = scalar_select %p29, %s31, %s22
      %p33 = scmp.ge.s32.totalorder %s32, 2
      %s34 = scalar_select %p33, 0, %s32
      %s35 = ssub.s32 %s23, %s30
      %p36 = scmp.eq.s32.totalorder %s35, 0
      %s38 = sadd.s32 %s37, 1
      %s39 = scalar_select %p36, %s37, %s38
      %p42 = pneg %p36
      %p43 = scmp.eq.s32.totalorder %s15, 1
      %p44 = por %p42, %p43
      %p45 = scmp.ne.s32.totalorder %s37, %s40
      %p46 = scmp.eq.s32.totalorder %s15, 0
      %p47 = por %p45, %p46
      %p48 = scmp.ne.s32.totalorder %s37, %s40
      %p49 = scmp.eq.s32.totalorder %s20, 1
      %p50 = por %p48, %p49
      %p51 = scmp.ne.s32.totalorder %s40, %s41
      %p52 = scmp.eq.s32.totalorder %s20, 0
      %p53 = por %p51, %p52
      %p54 = scmp.ne.s32.totalorder %s40, %s41
      %p55 = scmp.eq.s32.totalorder %s21, 1
      %p56 = por %p54, %p55
      %p58 = scmp.ne.s32.totalorder %s41, %s57
      %p59 = scmp.eq.s32.totalorder %s21, 0
      %p60 = por %p58, %p59
      %s61 = ssub.s32 %s22, %s34
      %p62 = scmp.eq.s32.totalorder %s61, 0
      %s64 = sadd.s32 %s63, 1
      %s65 = scalar_select %p62, %s63, %s64
      %p68 = pneg %p62
      %p69 = scmp.eq.s32.totalorder %s15, 1
      %p70 = por %p68, %p69
      %p71 = scmp.ne.s32.totalorder %s63, %s66
      %p72 = scmp.eq.s32.totalorder %s15, 0
      %p73 = por %p71, %p72
      %p74 = scmp.ne.s32.totalorder %s63, %s66
      %p75 = scmp.eq.s32.totalorder %s20, 1
      %p76 = por %p74, %p75
      %p77 = scmp.ne.s32.totalorder %s66, %s67
      %p78 = scmp.eq.s32.totalorder %s20, 0
      %p79 = por %p77, %p78
      %p80 = scmp.ne.s32.totalorder %s66, %s67
      %p81 = scmp.eq.s32.totalorder %s21, 1
      %p82 = por %p80, %p81
      %p84 = scmp.ne.s32.totalorder %s67, %s83
      %p85 = scmp.eq.s32.totalorder %s21, 0
      %p86 = por %p84, %p85
      %s87 = ssub.s32 %s23, %s30
      %p88 = scmp.eq.s32.totalorder %s87, 0
      %s90 = sadd.s32 %s89, 1
      %s91 = scalar_select %p88, %s89, %s90
      %p94 = pneg %p88
      %p95 = scmp.eq.s32.totalorder %s15, 1
      %p96 = por %p94, %p95
      %p97 = scmp.ne.s32.totalorder %s89, %s92
      %p98 = scmp.eq.s32.totalorder %s15, 0
      %p99 = por %p97, %p98
      %p100 = scmp.ne.s32.totalorder %s89, %s92
      %p101 = scmp.eq.s32.totalorder %s20, 1
      %p102 = por %p100, %p101
      %p103 = scmp.ne.s32.totalorder %s92, %s93
      %p104 = scmp.eq.s32.totalorder %s20, 0
      %p105 = por %p103, %p104
      %p106 = scmp.ne.s32.totalorder %s92, %s93
      %p107 = scmp.eq.s32.totalorder %s21, 1
      %p108 = por %p106, %p107
      %p110 = scmp.ne.s32.totalorder %s93, %s109
      %p111 = scmp.eq.s32.totalorder %s21, 0
      %p112 = por %p110, %p111
      %s113 = ssub.s32 %s23, %s30
      %s114 = ssub.s32 %s22, %s34
      %s115 = sor.u32 %s113, %s114
      %p116 = scmp.eq.s32.totalorder %s115, 0
      %s118 = sadd.s32 %s117, 1
      %s119 = scalar_select %p116, %s117, %s118
      %p122 = pneg %p116
      %p123 = scmp.eq.s32.totalorder %s15, 1
      %p124 = por %p122, %p123
      %p125 = scmp.ne.s32.totalorder %s117, %s120
      %p126 = scmp.eq.s32.totalorder %s15, 0
      %p127 = por %p125, %p126
      %p128 = scmp.ne.s32.totalorder %s117, %s120
      %p129 = scmp.eq.s32.totalorder %s20, 1
      %p130 = por %p128, %p129
      %p131 = scmp.ne.s32.totalorder %s120, %s121
      %p132 = scmp.eq.s32.totalorder %s20, 0
      %p133 = por %p131, %p132
      %p134 = scmp.ne.s32.totalorder %s120, %s121
      %p135 = scmp.eq.s32.totalorder %s21, 1
      %p136 = por %p134, %p135
      %p138 = scmp.ne.s32.totalorder %s121, %s137
      %p139 = scmp.eq.s32.totalorder %s21, 0
      %p140 = por %p138, %p139
      %p141 = scmp.le.s32.totalorder 1, %s15
      %p142 = scmp.lt.s32.totalorder %s15, 3
      %p143 = pnand %p141, %p142
      %p144 = pneg %p143
      // Predicated region
      $region9: #{tpu_custom_call.1} parent=5 // pred_check
        _
      $region10: #{tpu_custom_call.1} parent=5 // pred_check_branch
        %146 = sbr.rel (%p143) target = $region12
      $region11: #{tpu_custom_call.1} parent=5 // pred_region
        %s147 = ssub.s32 %s15, 1
        // Predicated region
        $region13: #{tpu_custom_call.1} parent=11 // pred_check
          %p148 = pneg %p53
        $region14: #{tpu_custom_call.1} parent=11 // pred_check_branch
          %150 = sbr.rel (%p148) target = $region16
        $region15: #{tpu_custom_call.1} parent=11 // pred_region
          %s151 = smul.u32 2, %s25
          %p152 = scmp.lt.s32.totalorder %s151, 1
          %s153 = scalar_select %p152, %s151, 1
          %s154 = smul.addr %s153, 4
          %s155 = scalar_lea.vmem %s0, %s154
          %s156 = smul.u32 2, %s25
        $region16: #{tpu_custom_call.1} parent=11 // pred_fallthru
          _
        // Predicated region
        $region17: #{tpu_custom_call.1} parent=11 // pred_check
          %p157 = pneg %p105
        $region18: #{tpu_custom_call.1} parent=11 // pred_check_branch
          %159 = sbr.rel (%p157) target = $region20
        $region19: #{tpu_custom_call.1} parent=11 // pred_region
          %s160 = smul.u32 2, %s25
          %p161 = scmp.lt.s32.totalorder %s160, 1
          %s162 = scalar_select %p161, %s160, 1
          %s163 = smul.addr %s162, 8
          %s164 = scalar_lea.vmem %s2, %s163
          %s165 = smul.u32 2, %s25
        $region20: #{tpu_custom_call.1} parent=11 // pred_fallthru
          _
      $region12: #{tpu_custom_call.1} parent=5 // pred_fallthru
        _
      %p166 = scmp.lt.s32.totalorder %s15, 2
      // Predicated region
      $region21: #{tpu_custom_call.1} parent=5 // pred_check
        %p167 = pneg %p166
      $region22: #{tpu_custom_call.1} parent=5 // pred_check_branch
        %169 = sbr.rel (%p167) target = $region24
      $region23: #{tpu_custom_call.1} parent=5 // pred_region
        // Predicated region
        $region25: #{tpu_custom_call.1} parent=23 // pred_check
          %p170 = pneg %p73
        $region26: #{tpu_custom_call.1} parent=23 // pred_check_branch
          %172 = sbr.rel (%p170) target = $region28
        $region27: #{tpu_custom_call.1} parent=23 // pred_region
          %s173 = sand.u32 %s63, 1
          %s174 = scalar_lea.sflag [#allocation3], %s173
          %s175 = sand.u32 %s63, 1
          %s176 = smul.addr %s175, 64
          %s177 = scalar_lea.vmem [#allocation2], %s176
          %s179 = ssub.s32 1024, 1024
          %180 = vsyncadd %s174, %s179
          %s181 = smul.addr %s22, 64
          %s182 = scalar_lea.hbm %s1, %s181
          %s183 = sshll.u32 %s177, 4
          %s184 = int_to_ptr.vmem [resolvable:$true] %s183
          %189 = dma.hbm_to_vmem [thread:$0]  %s182, 1024, %s184, %s174, 128, 64, 4
        $region28: #{tpu_custom_call.1} parent=23 // pred_fallthru
          _
      $region24: #{tpu_custom_call.1} parent=5 // pred_fallthru
        _
      %p190 = scmp.le.s32.totalorder 1, %s15
      %p191 = scmp.lt.s32.totalorder %s15, 3
      %p192 = pnand %p190, %p191
      %p193 = pneg %p192
      // Predicated region
      $region29: #{tpu_custom_call.1} parent=5 // pred_check
        _
      $region30: #{tpu_custom_call.1} parent=5 // pred_check_branch
        %195 = sbr.rel (%p192) target = $region32
      $region31: #{tpu_custom_call.1} parent=5 // pred_region
        %s196 = ssub.s32 %s15, 1
        %s197 = sand.u32 %s66, 1
        %s198 = scalar_lea.sflag [#allocation3], %s197
        %s199 = sand.u32 %s66, 1
        %s200 = smul.addr %s199, 64
        %s201 = scalar_lea.vmem [#allocation2], %s200
        // Predicated region
        $region33: #{tpu_custom_call.1} parent=31 // pred_check
          %p202 = pneg %p79
        $region34: #{tpu_custom_call.1} parent=31 // pred_check_branch
          %204 = sbr.rel (%p202) target = $region36
        $region35: #{tpu_custom_call.1} parent=31 // pred_region
          %205 = dma.done %s198, 1024
        $region36: #{tpu_custom_call.1} parent=31 // pred_fallthru
          _
        %s206 = smul.u32 2, %s25
        %p207 = scmp.lt.s32.totalorder %s206, 1
        %s208 = scalar_select %p207, %s206, 1
        %s209 = smul.addr %s208, 4
        %s210 = scalar_lea.vmem %s0, %s209
        %p211 = pneg %p53
        %p212 = pneg %p50
        %s213 = sand.u32 %s66, 1
        %s214 = scalar_lea.sflag [#allocation3], %s213
        %s215 = sand.u32 %s66, 1
        %s216 = smul.addr %s215, 64
        %s217 = scalar_lea.vmem [#allocation2], %s216
        %p218 = pneg %p79
        %p219 = pneg %p76
        %s220 = smul.u32 2, %s25
        %p221 = scmp.lt.s32.totalorder %s220, 1
        %s222 = scalar_select %p221, %s220, 1
        %s223 = smul.addr %s222, 8
        %s224 = scalar_lea.vmem %s2, %s223
        %p225 = pneg %p105
        %p226 = pneg %p102
        %p227 = pneg %p133
        %p228 = pneg %p130
        %s229 = sand.u32 %s120, 1
        %s230 = scalar_lea.sflag [#allocation4], %s229
        %s231 = sand.u32 %s120, 1
        %s232 = smul.addr %s231, 16
        %s233 = scalar_lea.vmem [#allocation5], %s232
        %s234 = smul.u32 2, %s25
        %p235 = scmp.lt.s32.totalorder %s234, 1
        %s236 = scalar_select %p235, %s234, 1
        %s237 = smul.addr %s236, 4
        %s238 = scalar_lea.vmem %s0, %s237
        %s239 = smul.u32 2, %s25
        %s240 = smul.u32 2, %s25
        %p241 = scmp.lt.s32.totalorder %s240, 1
        %s242 = scalar_select %p241, %s240, 1
        %s243 = smul.addr %s242, 8
        %s244 = scalar_lea.vmem %s2, %s243
        %s245 = smul.u32 2, %s25
        %s246 = smul.u32 2, %s25
        %v248 = vld [vmem:[%s238] sm:$0xf]
        %v249 = vld [vmem:[%s238 + $0x4] sm:$0xf]
        %v250 = vld [vmem:[%s201] sm:$0xf]
        %v251 = vld [vmem:[%s201 + $0x4] sm:$0xf]
        %v252 = vld [vmem:[%s201 + $0x8] sm:$0xf]
        %v253 = vld [vmem:[%s201 + $0xc] sm:$0xf]
        %v254 = vld [vmem:[%s201 + $0x10] sm:$0xf]
        %v255 = vld [vmem:[%s201 + $0x14] sm:$0xf]
        %v256 = vld [vmem:[%s201 + $0x18] sm:$0xf]
        %v257 = vld [vmem:[%s201 + $0x1c] sm:$0xf]
        %v258 = vld [vmem:[%s201 + $0x20] sm:$0xf]
        %v259 = vld [vmem:[%s201 + $0x24] sm:$0xf]
        %v260 = vld [vmem:[%s201 + $0x28] sm:$0xf]
        %v261 = vld [vmem:[%s201 + $0x2c] sm:$0xf]
        %v262 = vld [vmem:[%s201 + $0x30] sm:$0xf]
        %v263 = vld [vmem:[%s201 + $0x34] sm:$0xf]
        %v264 = vld [vmem:[%s201 + $0x38] sm:$0xf]
        %v265 = vld [vmem:[%s201 + $0x3c] sm:$0xf]
        %v268 = vunpack.c.l.b16 %v248
        %v269 = vunpack.c.l.b16 %v249
        %v270 = vpack.c.b16 %v269, %v268
        %v288 = vunpack.c.l.b16 %v250
        %v289 = vunpack.c.l.b16 %v251
        %v290 = vunpack.c.l.b16 %v252
        %v291 = vunpack.c.l.b16 %v253
        %v292 = vunpack.c.l.b16 %v254
        %v293 = vunpack.c.l.b16 %v255
        %v294 = vunpack.c.l.b16 %v256
        %v295 = vunpack.c.l.b16 %v257
        %v296 = vunpack.c.l.b16 %v258
        %v297 = vunpack.c.l.b16 %v259
        %v298 = vunpack.c.l.b16 %v260
        %v299 = vunpack.c.l.b16 %v261
        %v300 = vunpack.c.l.b16 %v262
        %v301 = vunpack.c.l.b16 %v263
        %v302 = vunpack.c.l.b16 %v264
        %v303 = vunpack.c.l.b16 %v265
        %v304 = vpack.c.b16 %v289, %v288
        %v305 = vpack.c.b16 %v291, %v290
        %v306 = vpack.c.b16 %v293, %v292
        %v307 = vpack.c.b16 %v295, %v294
        %v308 = vpack.c.b16 %v297, %v296
        %v309 = vpack.c.b16 %v299, %v298
        %v310 = vpack.c.b16 %v301, %v300
        %v311 = vpack.c.b16 %v303, %v302
        %320 = vmatprep.subr.bf16.mxu0 0
        %321 = vmatpush1.bf16.msra.mxu0 %v311
        %322 = vmatprep.subr.bf16.mxu0 0
        %323 = vmatpush1.bf16.msra.mxu0 %v310
        %324 = vmatprep.subr.bf16.mxu0 0
        %325 = vmatpush1.bf16.msra.mxu0 %v309
        %326 = vmatprep.subr.bf16.mxu0 0
        %327 = vmatpush1.bf16.msra.mxu0 %v308
        %328 = vmatprep.subr.bf16.mxu0 0
        %329 = vmatpush1.bf16.msra.mxu0 %v307
        %330 = vmatprep.subr.bf16.mxu0 0
        %331 = vmatpush1.bf16.msra.mxu0 %v306
        %332 = vmatprep.subr.bf16.mxu0 0
        %333 = vmatpush1.bf16.msra.mxu0 %v305
        %334 = vmatprep.subr.bf16.mxu0 0
        %335 = vmatpush1.bf16.msra.mxu0 %v304
        %336 = vmatprep.subr.bf16.mxu0 0
        %337 = vmatpush2.bf16.msra.mxu0 0
        %338 = vmatprep.subr.bf16.mxu0 0
        %339 = vmatpush2.bf16.msra.mxu0 0
        %340 = vmatprep.subr.bf16.mxu0 0
        %341 = vmatpush2.bf16.msra.mxu0 0
        %342 = vmatprep.subr.bf16.mxu0 0
        %343 = vmatpush2.bf16.msra.mxu0 0
        %344 = vmatprep.subr.bf16.mxu0 0
        %345 = vmatpush2.bf16.msra.mxu0 0
        %346 = vmatprep.subr.bf16.mxu0 0
        %347 = vmatpush2.bf16.msra.mxu0 0
        %348 = vmatprep.subr.bf16.mxu0 0
        %349 = vmatpush2.bf16.msra.mxu0 0
        %350 = vmatprep.subr.bf16.mxu0 0
        %351 = vmatpush2.bf16.msra.mxu0 0
        %352 = vmatprep.mubr.bf16.mxu0 0
        %353 = vmatmul.mubr.bf16.gmra.mxu0 %v270
        %v354 = vpop.f32.mrf.mxu0
        %v355 = vadd.f32 0.0, %v354
        %v356 = vpop.f32.mrf.mxu0
        %v357 = vpop.f32.mrf.mxu0
        %v358 = vadd.f32 0.0, %v357
        %v359 = vpop.f32.mrf.mxu0
        %360 = vdwg.mxu0
        %v361 = vmul.f32 %v355, %v355
        %v362 = vmul.f32 %v358, %v358
        %v363 = vsub.f32 1.0, %v361
        %v364 = vsub.f32 1.0, %v362
        %v365 = vmax.f32 %v363, 0.0
        %v366 = vmax.f32 %v364, 0.0
        %v367 = vmin.f32 %v365, 1.0
        %v368 = vmin.f32 %v366, 1.0
        %v369 = vrsqrt.pop %v367
        %v370 = vmul.f32 %v367, %v369
        %vm371 = vcmp.eq.f32.partialorder %v367, inf
        %v372 = vsel %vm371, %v367, %v370
        %vm373 = vcmp.eq.f32.partialorder %v367, 0.0
        %v374 = vand.u32 %v367, 2147483648
        %v375 = vsel %vm373, %v374, %v372
        %v376 = vrsqrt.pop %v368
        %v377 = vmul.f32 %v368, %v376
        %vm378 = vcmp.eq.f32.partialorder %v368, inf
        %v379 = vsel %vm378, %v368, %v377
        %vm380 = vcmp.eq.f32.partialorder %v368, 0.0
        %v381 = vand.u32 %v368, 2147483648
        %v382 = vsel %vm380, %v381, %v379
        %v383 = vmul.f32 %v355, 0.87758255
        %v384 = vmul.f32 %v358, 0.87758255
        %v385 = vmul.f32 %v375, 0.47942555
        %v386 = vmul.f32 %v382, 0.47942555
        %v387 = vsub.f32 %v383, %v385
        %v388 = vsub.f32 %v384, %v386
        %vm389 = vcmp.gt.f32.partialorder %v355, -0.87758255
        %vm390 = vcmp.gt.f32.partialorder %v358, -0.87758255
        %v391 = vsub.f32 %v355, 0.23971277
        %v392 = vsub.f32 %v358, 0.23971277
        %v393 = vsel %vm389, %v387, %v391
        %v394 = vsel %vm390, %v388, %v392
        %s395 = smul.u32 %s24, 128
        %v396 = vlaneseq
        %v397 = vand.u32 %v396, 127
        %v398 = vld [vmem:[%s244] sm:$0xff]
        %v399 = vld [vmem:[%s244 + $0x8] sm:$0xff]
        %v400 = vstv %s395
        %v401 = vsub.s32 %v398, %v400
        %v402 = vsub.s32 %v399, %v400
        %403 = vset.pattern.permute.xlu0 0
        %404 = vperm.xlu0 %403, %v401
        %v405 = vpop.permute.xlu0 %404
        %406 = vset.pattern.permute.xlu0 0
        %407 = vperm.xlu0 %406, %v402
        %v408 = vpop.permute.xlu0 %407
        %vm409 = vcmp.eq.s32.totalorder %v397, %v405
        %vm410 = vcmp.eq.s32.totalorder %v397, %v408
        %v411 = vsel %vm409, %v393, %v355
        %v412 = vsel %vm410, %v394, %v358
        %v413 = vmul.f32 %v411, 64.0
        %v414 = vmul.f32 %v412, 64.0
        %415 = vst [vmem:[%s233] sm:$0xff] %v413
        %416 = vst [vmem:[%s233 + $0x8] sm:$0xff] %v414
        %s417 = sand.u32 %s120, 1
        %s418 = scalar_lea.sflag [#allocation4], %s417
        %s419 = sand.u32 %s120, 1
        %s420 = smul.addr %s419, 16
        %s421 = scalar_lea.vmem [#allocation5], %s420
        // Predicated region
        $region37: #{tpu_custom_call.1} parent=31 // pred_check
          %p422 = pneg %p130
        $region38: #{tpu_custom_call.1} parent=31 // pred_check_branch
          %424 = sbr.rel (%p422) target = $region40
        $region39: #{tpu_custom_call.1} parent=31 // pred_region
          %s425 = smul.u32 2, %s25
          %s427 = ssub.s32 256, 256
          %428 = vsyncadd %s418, %s427
          %s429 = smul.addr %s425, 2
          %s430 = sadd.s32 %s24, %s429
          %s431 = smul.addr %s430, 128
          %s432 = scalar_lea.hbm %s3, %s431
          %s433 = sshll.u32 %s421, 4
          %s434 = int_to_ptr.vmem [resolvable:$true] %s433
          %439 = dma.vmem_to_hbm [thread:$0]  %s434, 256, %s432, %s418, 128, 256, 8
        $region40: #{tpu_custom_call.1} parent=31 // pred_fallthru
          _
      $region32: #{tpu_custom_call.1} parent=5 // pred_fallthru
        _
      %p440 = scmp.le.s32.totalorder 2, %s15
      // Predicated region
      $region41: #{tpu_custom_call.1} parent=5 // pred_check
        %p441 = pneg %p440
      $region42: #{tpu_custom_call.1} parent=5 // pred_check_branch
        %443 = sbr.rel (%p441) target = $region44
      $region43: #{tpu_custom_call.1} parent=5 // pred_region
        %s444 = ssub.s32 %s15, 2
        // Predicated region
        $region45: #{tpu_custom_call.1} parent=43 // pred_check
          %p445 = pneg %p136
        $region46: #{tpu_custom_call.1} parent=43 // pred_check_branch
          %447 = sbr.rel (%p445) target = $region48
        $region47: #{tpu_custom_call.1} parent=43 // pred_region
          %s448 = sand.u32 %s121, 1
          %s449 = scalar_lea.sflag [#allocation4], %s448
          %s450 = sand.u32 %s121, 1
          %s451 = smul.addr %s450, 16
          %s452 = scalar_lea.vmem [#allocation5], %s451
          %453 = dma.done %s449, 256
        $region48: #{tpu_custom_call.1} parent=43 // pred_fallthru
          _
      $region44: #{tpu_custom_call.1} parent=5 // pred_fallthru
        _
    $region6: #{tpu_custom_call.1} parent=1 // loop_footer
      %s19 = sadd.s32 1, %s15
    $region7: #{tpu_custom_call.1} parent=1 // loop_footer_branch
      %14 = sbr.rel target = $region3
    $region8: #{tpu_custom_call.1} parent=1 // loop_exit
      _
    %454 = vsyncpa [#allocation3], 1
    %s455 = scalar_lea.sflag [#allocation3], 1
    %456 = vsyncpa %s455, 1
    %457 = vsyncpa [#allocation4], 1
    %s458 = scalar_lea.sflag [#allocation4], 1
    %459 = vsyncpa %s458, 1

</llo_original>
